<compile_context>
chip_gen: v5e
topology: v5e:2x2
jax: 0.10.0
libtpu: 0.0.40
codegen_flags: <defaults>
</compile_context>

<pallas_src>
import jax
import jax.numpy as jnp
from jax.experimental import pallas as pl
from jax.experimental.pallas import tpu as pltpu


OUT_DTYPE = jnp.bfloat16      # stand-in for torch.float16 weights_dtype on TPU
WEIGHT_DTYPE = jnp.bfloat16   # streaming dtype for W1 / W2 (MXU-native)

# Conservative single-block threshold: fits the v7x 32 MiB default scoped VMEM with
# headroom; v5e/v6e (128 MiB physical) are trivially fine.
VMEM_BUDGET_BYTES = 24 * 1024 * 1024


def _mlp_cast_kernel(x_ref, w1_ref, b1_ref, b2_ref, w2_ref, o_ref):
    """One grid step computes an output column tile: SiLU(x@W1+b1) @ W2[:, tile] + b2[tile].

    x_ref  : (B_pad, IN)      bf16  resident across grid
    w1_ref : (IN, H_pad)      bf16  resident across grid
    b1_ref : (1, H_pad)       f32   resident across grid
    b2_ref : (1, H_pad)       f32   resident across grid (sliced in-kernel)
    w2_ref : (H_pad, TN)      bf16  streamed / double-buffered column tile
    o_ref  : (B_pad, TN)      bf16  per-tile output
    """
    j = pl.program_id(0)
    tn = o_ref.shape[-1]

    # Stage 1 (tiny: B_pad x IN x H_pad FLOPs): bf16 MXU inputs, f32 accumulate.
    h = jnp.dot(x_ref[...], w1_ref[...],
                preferred_element_type=jnp.float32) + b1_ref[...]
    # SiLU in f32: the sigmoid goes to the EUP slot (idle on this DMA-bound kernel).
    h = h * jax.nn.sigmoid(h)

    # Stage 2: per-tile h @ W2[:, j*TN:(j+1)*TN], bf16 MXU inputs, f32 accumulate.
    y = jnp.dot(h.astype(jnp.bfloat16), w2_ref[...],
                preferred_element_type=jnp.float32)

    # Bias from the resident b2 (static trace-time branch: full ref vs. aligned slice).
    if tn == b2_ref.shape[-1]:
        y = y + b2_ref[...]
    else:
        start = pl.multiple_of(j * tn, 128)
        y = y + b2_ref[:, pl.ds(start, tn)]

    # The ToWeightsDType cast: .to(self.dtype) -- single final cast at the store.
    o_ref[...] = y.astype(o_ref.dtype)


def _pick_tile_n(h_pad, b_pad, in_dim, budget):
    """Column-tile width for W2. Prefers a single block; tiles only when VMEM-forced."""

    def usage(tn):
        w2_stream = 2 * h_pad * tn * 2        # double-buffered bf16 W2 tile
        out_stream = 2 * b_pad * tn * 2       # double-buffered bf16 output tile
        resident = (b_pad * in_dim * 2        # x   bf16
                    + in_dim * h_pad * 2      # W1  bf16
                    + 2 * h_pad * 4)          # b1 + b2 f32
        return w2_stream + out_stream + resident

    if usage(h_pad) <= budget:
        return h_pad                          # single grid step

    # Tiled fallback: largest multiple-of-128 divisor of H_pad that fits the budget,
    # preferring an even number of tiles (balanced v7x megacore split).
    candidates = [tn for tn in range(h_pad - 128, 0, -128)
                  if h_pad % tn == 0 and usage(tn) <= budget]
    even = [tn for tn in candidates if (h_pad // tn) % 2 == 0]
    pool = even if even else candidates
    return pool[0] if pool else 128


def to_weights_dtype_forward(x, w1, b1, w2, b2, out_dtype=OUT_DTYPE,
                             vmem_budget_bytes=VMEM_BUDGET_BYTES):
    """x: (B, in_dim); w1: (in_dim, H); b1: (H,); w2: (H, H); b2: (H,). Returns (B, H) bf16."""
    B, IN = x.shape
    H = w2.shape[1]

    # Pad H to a multiple of 128 -> lane-dense output stores / MXU-friendly tiles.
    H_pad = max(128, -(-H // 128) * 128)
    # Pad batch only to the bf16 sublane packing (16); more padding would just add
    # store bytes on a DMA-bound kernel.
    B_pad = max(16, -(-B // 16) * 16)

    x_p = jnp.pad(x.astype(jnp.float32),
                  ((0, B_pad - B), (0, 0))).astype(jnp.bfloat16)
    w1_p = jnp.pad(w1.astype(jnp.float32),
                   ((0, 0), (0, H_pad - H))).astype(WEIGHT_DTYPE)
    w2_p = jnp.pad(w2.astype(jnp.float32),
                   ((0, H_pad - H), (0, H_pad - H))).astype(WEIGHT_DTYPE)
    b1_p = jnp.pad(b1.astype(jnp.float32), (0, H_pad - H)).reshape(1, H_pad)
    b2_p = jnp.pad(b2.astype(jnp.float32), (0, H_pad - H)).reshape(1, H_pad)

    TN = _pick_tile_n(H_pad, B_pad, IN, vmem_budget_bytes)
    grid = (H_pad // TN,)

    resident = lambda j: (0, 0)
    tiled = lambda j: (0, j)

    out = pl.pallas_call(
        _mlp_cast_kernel,
        out_shape=jax.ShapeDtypeStruct((B_pad, H_pad), out_dtype),
        grid_spec=pl.GridSpec(
            grid=grid,
            in_specs=[
                pl.BlockSpec((B_pad, IN), resident),   # x      (resident, bf16)
                pl.BlockSpec((IN, H_pad), resident),   # W1     (resident, bf16)
                pl.BlockSpec((1, H_pad), resident),    # b1     (resident, f32)
                pl.BlockSpec((1, H_pad), resident),    # b2     (resident, f32)
                pl.BlockSpec((H_pad, TN), tiled),      # W2     (streamed column tiles)
            ],
            out_specs=pl.BlockSpec((B_pad, TN), tiled),
        ),
        compiler_params=pltpu.CompilerParams(
            # Independent output tiles -> shard across TensorCores on v7x when tiled;
            # a no-op when the grid collapses to 1.
            dimension_semantics=("parallel",),
        ),
    )(x_p, w1_p, b1_p, b2_p, w2_p)

    return out[:B, :H]


def reference_forward(x, w1, b1, w2, b2, out_dtype=OUT_DTYPE):
    x = x.astype(jnp.float32)
    w1 = w1.astype(jnp.float32)
    w2 = w2.astype(jnp.float32)
    h = x @ w1 + b1.astype(jnp.float32)
    h = h * jax.nn.sigmoid(h)
    y = h @ w2 + b2.astype(jnp.float32)
    return y.astype(out_dtype)


def _run_case(key, B, IN, H):
    k_x, k_w1, k_b1, k_w2, k_b2 = jax.random.split(key, 5)
    x = jax.random.normal(k_x, (B, IN), dtype=jnp.float32)
    w1 = jax.random.normal(k_w1, (IN, H), dtype=jnp.float32) * 0.05
    b1 = jax.random.normal(k_b1, (H,), dtype=jnp.float32) * 0.01
    w2 = jax.random.normal(k_w2, (H, H), dtype=jnp.float32) * 0.05
    b2 = jax.random.normal(k_b2, (H,), dtype=jnp.float32) * 0.01

    out = to_weights_dtype_forward(x, w1, b1, w2, b2)
    out = jax.block_until_ready(out)
    ref = reference_forward(x, w1, b1, w2, b2)

    assert out.shape == (B, H), out.shape
    assert out.dtype == OUT_DTYPE, out.dtype
    assert jnp.allclose(out.astype(jnp.float32), ref.astype(jnp.float32),
                        atol=1e-2, rtol=1e-2), (B, IN, H)


if __name__ == "__main__":
    key = jax.random.PRNGKey(0)
    k1, k2 = jax.random.split(key)

    # Small shape consistent with TimestepEmbedding(16, hidden): batch=2, in_dim=16, hidden=32.
    _run_case(k1, B=2, IN=16, H=32)
    # Non-multiple-of-128 hidden to exercise the H-padding + single-block path.
    _run_case(k2, B=2, IN=16, H=320)

    print("KERNEL_OK")
</pallas_src>

<mosaic_0001>
module attributes {stable_mosaic.version = 11 : i64} {
  func.func @_mlp_cast_kernel(%arg0: i32, %arg1: memref<16x16xbf16, #tpu.memory_space<vmem>>, %arg2: memref<16x128xbf16, #tpu.memory_space<vmem>>, %arg3: memref<1x128xf32, #tpu.memory_space<vmem>>, %arg4: memref<1x128xf32, #tpu.memory_space<vmem>>, %arg5: memref<128x128xbf16, #tpu.memory_space<vmem>>, %arg6: memref<16x128xbf16, #tpu.memory_space<vmem>>) attributes {dimension_semantics = [#tpu.dimension_semantics<parallel>], iteration_bounds = array<i64: 1>, scalar_prefetch = 0 : i64, scratch_operands = 0 : i64, tpu.core_type = #tpu.core_type<tc>, window_params = [{pipeline_mode = #tpu.pipeline_mode<synchronous>, transform_indices = @transform_0, window_bounds = array<i64: 16, 16>}, {pipeline_mode = #tpu.pipeline_mode<synchronous>, transform_indices = @transform_1, window_bounds = array<i64: 16, 128>}, {pipeline_mode = #tpu.pipeline_mode<synchronous>, transform_indices = @transform_2, window_bounds = array<i64: 1, 128>}, {pipeline_mode = #tpu.pipeline_mode<synchronous>, transform_indices = @transform_3, window_bounds = array<i64: 1, 128>}, {transform_indices = @transform_4, window_bounds = array<i64: 128, 128>}, {transform_indices = @transform_5, window_bounds = array<i64: 16, 128>}]} {
    %c0 = arith.constant 0 : index
    %c0_0 = arith.constant 0 : index
    %0 = vector.load %arg1[%c0, %c0_0] : memref<16x16xbf16, #tpu.memory_space<vmem>>, vector<16x16xbf16>
    %c0_1 = arith.constant 0 : index
    %c0_2 = arith.constant 0 : index
    %1 = vector.load %arg2[%c0_1, %c0_2] : memref<16x128xbf16, #tpu.memory_space<vmem>>, vector<16x128xbf16>
    %cst = arith.constant dense<0.000000e+00> : vector<16x128xf32>
    %2 = tpu.matmul %0, %1, %cst {dimension_numbers = #tpu.dot_dimension_numbers<[1], [0], [0], [1], [0, 0, 1, 1], [], []>} : vector<16x16xbf16>, vector<16x128xbf16>, vector<16x128xf32> -> vector<16x128xf32>
    %c0_3 = arith.constant 0 : index
    %c0_4 = arith.constant 0 : index
    %3 = vector.load %arg3[%c0_3, %c0_4] : memref<1x128xf32, #tpu.memory_space<vmem>>, vector<1x128xf32>
    %4 = vector.broadcast %3 : vector<1x128xf32> to vector<16x128xf32>
    %5 = arith.addf %2, %4 : vector<16x128xf32>
    %6 = arith.negf %5 : vector<16x128xf32>
    %7 = math.exp %6 : vector<16x128xf32>
    %cst_5 = arith.constant 1.000000e+00 : f32
    %8 = vector.broadcast %cst_5 : f32 to vector<16x128xf32>
    %9 = arith.addf %8, %7 : vector<16x128xf32>
    %10 = arith.divf %8, %9 : vector<16x128xf32>
    %11 = arith.mulf %5, %10 : vector<16x128xf32>
    %12 = arith.truncf %11 : vector<16x128xf32> to vector<16x128xbf16>
    %c0_6 = arith.constant 0 : index
    %c0_7 = arith.constant 0 : index
    %13 = vector.load %arg5[%c0_6, %c0_7] : memref<128x128xbf16, #tpu.memory_space<vmem>>, vector<128x128xbf16>
    %cst_8 = arith.constant dense<0.000000e+00> : vector<16x128xf32>
    %14 = tpu.matmul %12, %13, %cst_8 {dimension_numbers = #tpu.dot_dimension_numbers<[1], [0], [0], [1], [0, 0, 1, 1], [], []>} : vector<16x128xbf16>, vector<128x128xbf16>, vector<16x128xf32> -> vector<16x128xf32>
    %c0_9 = arith.constant 0 : index
    %c0_10 = arith.constant 0 : index
    %15 = vector.load %arg4[%c0_9, %c0_10] : memref<1x128xf32, #tpu.memory_space<vmem>>, vector<1x128xf32>
    %16 = vector.broadcast %15 : vector<1x128xf32> to vector<16x128xf32>
    %17 = arith.addf %14, %16 : vector<16x128xf32>
    %18 = arith.truncf %17 : vector<16x128xf32> to vector<16x128xbf16>
    %c0_11 = arith.constant 0 : index
    %c0_12 = arith.constant 0 : index
    %19 = vector.load %arg6[%c0_11, %c0_12] : memref<16x128xbf16, #tpu.memory_space<vmem>>, vector<16x128xbf16>
    tpu.vector_store %arg6[%c0_11, %c0_12], %18 {strides = array<i32>} : memref<16x128xbf16, #tpu.memory_space<vmem>>, vector<16x128xbf16>,
    return
  }
  func.func @transform_0(%arg0: i32) -> (i32, i32) {
    %c0_i32 = arith.constant 0 : i32
    %c0_i32_0 = arith.constant 0 : i32
    %c0_i32_1 = arith.constant 0 : i32
    return %c0_i32, %c0_i32_0 : i32, i32
  }
  func.func @transform_1(%arg0: i32) -> (i32, i32) {
    %c0_i32 = arith.constant 0 : i32
    %c0_i32_0 = arith.constant 0 : i32
    %c0_i32_1 = arith.constant 0 : i32
    return %c0_i32, %c0_i32_0 : i32, i32
  }
  func.func @transform_2(%arg0: i32) -> (i32, i32) {
    %c0_i32 = arith.constant 0 : i32
    %c0_i32_0 = arith.constant 0 : i32
    %c0_i32_1 = arith.constant 0 : i32
    return %c0_i32, %c0_i32_0 : i32, i32
  }
  func.func @transform_3(%arg0: i32) -> (i32, i32) {
    %c0_i32 = arith.constant 0 : i32
    %c0_i32_0 = arith.constant 0 : i32
    %c0_i32_1 = arith.constant 0 : i32
    return %c0_i32, %c0_i32_0 : i32, i32
  }
  func.func @transform_4(%arg0: i32) -> (i32, i32) {
    %c0_i32 = arith.constant 0 : i32
    %c0_i32_0 = arith.constant 0 : i32
    return %c0_i32, %arg0 : i32, i32
  }
  func.func @transform_5(%arg0: i32) -> (i32, i32) {
    %c0_i32 = arith.constant 0 : i32
    %c0_i32_0 = arith.constant 0 : i32
    return %c0_i32, %arg0 : i32, i32
  }
}

</mosaic_0001>

<llo_original>
// kernel: tpu_custom_call.1
$region0: #{tpu_custom_call.1}
  #allocation0 [shape = 'u32[]', space=smem, size = 0x4, offset = 0x4, fixed_abs, tag = 'smem constant byte address 0x4 - core index']
  #allocation1 [shape = 'u32[72,128]{1,0:T(1,128)}', space=vmem, size = 0x9000, scoped, tag = 'internal scratch']
  %s0 = inlined_call_operand.hbm [shape: bf16[16,16], index: 0, kind: input, shape index: {}]
  %s1 = inlined_call_operand.hbm [shape: bf16[16,128], index: 1, kind: input, shape index: {}]
  %s2 = inlined_call_operand.vmem [shape: f32[1,128], index: 2, kind: input, shape index: {}]
  %s3 = inlined_call_operand.vmem [shape: f32[1,128], index: 3, kind: input, shape index: {}]
  %s4 = inlined_call_operand.hbm [shape: bf16[128,128], index: 4, kind: input, shape index: {}]
  %s5 = inlined_call_operand.hbm [shape: bf16[16,128], index: 5, kind: output, shape index: {}]
  %s6 = sld [smem:[#allocation0]]
  $region42: #{tpu_custom_call.1} parent=0
    _
  %s8 = ssub.s32 1, %s6
  %s9 = scalar_select 0, %s8, %s6
  $region1: #{tpu_custom_call.1} parent=0
    #allocation2 [shape = 'u8[4096]{0}', space=vmem, size = 0x1000, scoped, tag = 'input window, operand 0, single buffered']
    #allocation3 [shape = 's32[1]{0}', space=sflag, size = 0x4, scoped, tag = 'scoped memory for tpu_custom_call.1']
    #allocation4 [shape = 's32[1]{0}', space=sflag, size = 0x4, scoped, tag = 'scoped memory for tpu_custom_call.1']
    #allocation5 [shape = 'u8[4096]{0}', space=vmem, size = 0x1000, scoped, tag = 'input window, operand 1, single buffered']
    #allocation6 [shape = 's32[1]{0}', space=sflag, size = 0x4, scoped, tag = 'scoped memory for tpu_custom_call.1']
    #allocation7 [shape = 'u8[32768]{0}', space=vmem, size = 0x8000, scoped, tag = 'input window, operand 4, single buffered']
    #allocation8 [shape = 'u8[4096]{0}', space=vmem, size = 0x1000, scoped, tag = 'output window, operand 0, single buffered']
    %10 = vsyncpa [#allocation3], 0
    %11 = vsyncpa [#allocation6], 0
    %12 = vsyncpa [#allocation4], 0
    // Predicated region
    $region2: #{tpu_custom_call.1} parent=1 // pred_check
      _
    $region3: #{tpu_custom_call.1} parent=1 // pred_check_branch
      %14 = sbr.rel (0) target = $region5
    $region4: #{tpu_custom_call.1} parent=1 // pred_region
      %16 = vsyncadd [#allocation3], 0
      %s17 = sshll.u32 %s0, 4
      %s18 = int_to_ptr.hbm [resolvable:$true] %s17
      %s19 = sshll.u32 [#allocation2], 4
      %s20 = int_to_ptr.vmem [resolvable:$true] %s19
      %25 = dma.hbm_to_vmem [thread:$0]  %s18, 128, %s20, [#allocation3], 64, 64, 4
    $region5: #{tpu_custom_call.1} parent=1 // pred_fallthru
      _
    // Predicated region
    $region6: #{tpu_custom_call.1} parent=1 // pred_check
      _
    $region7: #{tpu_custom_call.1} parent=1 // pred_check_branch
      %27 = sbr.rel (0) target = $region9
    $region8: #{tpu_custom_call.1} parent=1 // pred_region
      %29 = vsyncadd [#allocation6], 0
      %s30 = sshll.u32 %s1, 4
      %s31 = int_to_ptr.hbm [resolvable:$true] %s30
      %s32 = sshll.u32 [#allocation5], 4
      %s33 = int_to_ptr.vmem [resolvable:$true] %s32
      %38 = dma.hbm_to_vmem [thread:$0]  %s31, 128, %s33, [#allocation6], 64, 64, 4
    $region9: #{tpu_custom_call.1} parent=1 // pred_fallthru
      _
    // Predicated region
    $region10: #{tpu_custom_call.1} parent=1 // pred_check
      _
    $region11: #{tpu_custom_call.1} parent=1 // pred_check_branch
      %40 = sbr.rel (0) target = $region13
    $region12: #{tpu_custom_call.1} parent=1 // pred_region
      _
    $region13: #{tpu_custom_call.1} parent=1 // pred_fallthru
      _
    // Predicated region
    $region14: #{tpu_custom_call.1} parent=1 // pred_check
      _
    $region15: #{tpu_custom_call.1} parent=1 // pred_check_branch
      %42 = sbr.rel (0) target = $region17
    $region16: #{tpu_custom_call.1} parent=1 // pred_region
      _
    $region17: #{tpu_custom_call.1} parent=1 // pred_fallthru
      _
    // Predicated region
    $region18: #{tpu_custom_call.1} parent=1 // pred_check
      _
    $region19: #{tpu_custom_call.1} parent=1 // pred_check_branch
      %44 = sbr.rel (0) target = $region21
    $region20: #{tpu_custom_call.1} parent=1 // pred_region
      %46 = vsyncadd [#allocation6], 0
      %s47 = sshll.u32 %s4, 4
      %s48 = int_to_ptr.hbm [resolvable:$true] %s47
      %s49 = sshll.u32 [#allocation7], 4
      %s50 = int_to_ptr.vmem [resolvable:$true] %s49
      %55 = dma.hbm_to_vmem [thread:$0]  %s48, 1024, %s50, [#allocation6], 64, 64, 4
    $region21: #{tpu_custom_call.1} parent=1 // pred_fallthru
      _
    // Predicated region
    $region22: #{tpu_custom_call.1} parent=1 // pred_check
      _
    $region23: #{tpu_custom_call.1} parent=1 // pred_check_branch
      %57 = sbr.rel (0) target = $region25
    $region24: #{tpu_custom_call.1} parent=1 // pred_region
      %59 = dma.done [#allocation3], 128
    $region25: #{tpu_custom_call.1} parent=1 // pred_fallthru
      _
    // Predicated region
    $region26: #{tpu_custom_call.1} parent=1 // pred_check
      _
    $region27: #{tpu_custom_call.1} parent=1 // pred_check_branch
      %61 = sbr.rel (0) target = $region29
    $region28: #{tpu_custom_call.1} parent=1 // pred_region
      %63 = dma.done [#allocation6], 128
    $region29: #{tpu_custom_call.1} parent=1 // pred_fallthru
      _
    // Predicated region
    $region30: #{tpu_custom_call.1} parent=1 // pred_check
      _
    $region31: #{tpu_custom_call.1} parent=1 // pred_check_branch
      %65 = sbr.rel (0) target = $region33
    $region32: #{tpu_custom_call.1} parent=1 // pred_region
      %67 = dma.done [#allocation6], 1024
    $region33: #{tpu_custom_call.1} parent=1 // pred_fallthru
      _
    %v69 = vld [vmem:[#allocation2] sm:$0xf]
    %v70 = vld [vmem:[#allocation2 + $0x4] sm:$0xf]
    %v71 = vld [vmem:[#allocation5] sm:$0xf]
    %v72 = vld [vmem:[#allocation5 + $0x4] sm:$0xf]
    %v73 = vld [vmem:[%s2] sm:$0x1]
    %v75 = vperm.slane %v73, 0
    %v79 = vunpack.c.l.b16 %v69
    %v80 = vunpack.c.l.b16 %v70
    %v81 = vpack.c.b16 %v80, %v79
    %v84 = vunpack.c.l.b16 %v71
    %v85 = vunpack.c.l.b16 %v72
    %v86 = vpack.c.b16 %v85, %v84
    %vm88 = vcmask 130048
    %v90 = vsel %vm88, %v81, 0
    %92 = vmatpush.bf16.msra.mxu0 0
    %93 = vmatpush.bf16.msra.mxu0 0
    %94 = vmatpush.bf16.msra.mxu0 0
    %95 = vmatpush.bf16.msra.mxu0 0
    %96 = vmatpush.bf16.msra.mxu0 0
    %97 = vmatpush.bf16.msra.mxu0 0
    %98 = vmatpush.bf16.msra.mxu0 0
    %99 = vmatpush.bf16.msra.mxu0 %v86
    %100 = vmatmul.bf16.gmra.mxu0 %v90
    %v101 = vpop.f32.mrf.mxu0
    %v102 = vadd.f32 %v75, %v101
    %v103 = vpop.f32.mrf.mxu0
    %v104 = vadd.f32 %v75, %v103
    %105 = vdwg.mxu0
    %v106 = vxor.u32 %v102, 2147483648
    %v107 = vxor.u32 %v104, 2147483648
    %v108 = vmul.f32 %v106, 1.442695
    %v109 = vpow.pop %v108
    %v110 = vmul.f32 %v107, 1.442695
    %v111 = vpow.pop %v110
    %v112 = vadd.f32 %v109, 1.0
    %v113 = vadd.f32 %v111, 1.0
    %v114 = vrcp.pop %v112
    %v115 = vmul.f32 %v112, %v114
    %v116 = vsub.f32 1.0, %v115
    %v117 = vmul.f32 %v114, %v116
    %v118 = vadd.f32 %v114, %v117
    %vm119 = vweird.f32 %v112
    %vm120 = vweird.f32 %v114
    %vm121 = vmor %vm119, %vm120
    %v122 = vsel %vm121, %v114, %v118
    %v123 = vand.u32 2147483647, %v112
    %vm124 = vcmp.eq.f32.partialorder %v123, 8.507059e+37
    %v125 = vand.u32 %v112, 2147483648
    %v126 = vor.u32 1.1754944e-38, %v125
    %v127 = vsel %vm124, %v126, %v122
    %v128 = vmul.f32 1.0, %v127
    %v129 = vrcp.pop %v113
    %v130 = vmul.f32 %v113, %v129
    %v131 = vsub.f32 1.0, %v130
    %v132 = vmul.f32 %v129, %v131
    %v133 = vadd.f32 %v129, %v132
    %vm134 = vweird.f32 %v113
    %vm135 = vweird.f32 %v129
    %vm136 = vmor %vm134, %vm135
    %v137 = vsel %vm136, %v129, %v133
    %v138 = vand.u32 2147483647, %v113
    %vm139 = vcmp.eq.f32.partialorder %v138, 8.507059e+37
    %v140 = vand.u32 %v113, 2147483648
    %v141 = vor.u32 1.1754944e-38, %v140
    %v142 = vsel %vm139, %v141, %v137
    %v143 = vmul.f32 1.0, %v142
    %v144 = vmul.f32 %v102, %v128
    %v145 = vmul.f32 %v104, %v143
    %v146 = vpack.c.bf16 %v145, %v144
    %v147 = vld [vmem:[#allocation7] sm:$0xf]
    %v148 = vld [vmem:[#allocation7 + $0x4] sm:$0xf]
    %v149 = vld [vmem:[#allocation7 + $0x8] sm:$0xf]
    %v150 = vld [vmem:[#allocation7 + $0xc] sm:$0xf]
    %v151 = vld [vmem:[#allocation7 + $0x10] sm:$0xf]
    %v152 = vld [vmem:[#allocation7 + $0x14] sm:$0xf]
    %v153 = vld [vmem:[#allocation7 + $0x18] sm:$0xf]
    %v154 = vld [vmem:[#allocation7 + $0x1c] sm:$0xf]
    %v155 = vld [vmem:[#allocation7 + $0x20] sm:$0xf]
    %v156 = vld [vmem:[#allocation7 + $0x24] sm:$0xf]
    %v157 = vld [vmem:[#allocation7 + $0x28] sm:$0xf]
    %v158 = vld [vmem:[#allocation7 + $0x2c] sm:$0xf]
    %v159 = vld [vmem:[#allocation7 + $0x30] sm:$0xf]
    %v160 = vld [vmem:[#allocation7 + $0x34] sm:$0xf]
    %v161 = vld [vmem:[#allocation7 + $0x38] sm:$0xf]
    %v162 = vld [vmem:[#allocation7 + $0x3c] sm:$0xf]
    %v163 = vld [vmem:[%s3] sm:$0x1]
    %v165 = vperm.slane %v163, 0
    %v183 = vunpack.c.l.b16 %v147
    %v184 = vunpack.c.l.b16 %v148
    %v185 = vunpack.c.l.b16 %v149
    %v186 = vunpack.c.l.b16 %v150
    %v187 = vunpack.c.l.b16 %v151
    %v188 = vunpack.c.l.b16 %v152
    %v189 = vunpack.c.l.b16 %v153
    %v190 = vunpack.c.l.b16 %v154
    %v191 = vunpack.c.l.b16 %v155
    %v192 = vunpack.c.l.b16 %v156
    %v193 = vunpack.c.l.b16 %v157
    %v194 = vunpack.c.l.b16 %v158
    %v195 = vunpack.c.l.b16 %v159
    %v196 = vunpack.c.l.b16 %v160
    %v197 = vunpack.c.l.b16 %v161
    %v198 = vunpack.c.l.b16 %v162
    %v199 = vpack.c.b16 %v184, %v183
    %v200 = vpack.c.b16 %v186, %v185
    %v201 = vpack.c.b16 %v188, %v187
    %v202 = vpack.c.b16 %v190, %v189
    %v203 = vpack.c.b16 %v192, %v191
    %v204 = vpack.c.b16 %v194, %v193
    %v205 = vpack.c.b16 %v196, %v195
    %v206 = vpack.c.b16 %v198, %v197
    %215 = vmatpush.bf16.msra.mxu0 %v206
    %216 = vmatpush.bf16.msra.mxu0 %v205
    %217 = vmatpush.bf16.msra.mxu0 %v204
    %218 = vmatpush.bf16.msra.mxu0 %v203
    %219 = vmatpush.bf16.msra.mxu0 %v202
    %220 = vmatpush.bf16.msra.mxu0 %v201
    %221 = vmatpush.bf16.msra.mxu0 %v200
    %222 = vmatpush.bf16.msra.mxu0 %v199
    %223 = vmatmul.bf16.gmra.mxu0 %v146
    %v224 = vpop.f32.mrf.mxu0
    %v225 = vadd.f32 %v165, %v224
    %v226 = vpop.f32.mrf.mxu0
    %v227 = vadd.f32 %v165, %v226
    %228 = vdwg.mxu0
    %v229 = vpack.c.bf16 %v225, %v225
    %v230 = vpack.c.bf16 %v227, %v227
    %231 = vst [vmem:[#allocation8] sm:$0xf] %v229
    %232 = vst [vmem:[#allocation8 + $0x4] sm:$0xf] %v230
    // Predicated region
    $region34: #{tpu_custom_call.1} parent=1 // pred_check
      _
    $region35: #{tpu_custom_call.1} parent=1 // pred_check_branch
      %234 = sbr.rel (0) target = $region37
    $region36: #{tpu_custom_call.1} parent=1 // pred_region
      %236 = vsyncadd [#allocation4], 0
      %s237 = sshll.u32 [#allocation8], 4
      %s238 = int_to_ptr.vmem [resolvable:$true] %s237
      %s239 = sshll.u32 %s5, 4
      %s240 = int_to_ptr.hbm [resolvable:$true] %s239
      %245 = dma.vmem_to_hbm [thread:$0]  %s238, 128, %s240, [#allocation4], 64, 64, 4
    $region37: #{tpu_custom_call.1} parent=1 // pred_fallthru
      _
    // Predicated region
    $region38: #{tpu_custom_call.1} parent=1 // pred_check
      _
    $region39: #{tpu_custom_call.1} parent=1 // pred_check_branch
      %247 = sbr.rel (0) target = $region41
    $region40: #{tpu_custom_call.1} parent=1 // pred_region
      %249 = dma.done [#allocation4], 128
    $region41: #{tpu_custom_call.1} parent=1 // pred_fallthru
      _
    %250 = vsyncpa [#allocation3], 1
    %251 = vsyncpa [#allocation6], 1
    %252 = vsyncpa [#allocation4], 1

</llo_original>
